<compile_context>
chip_gen: v5e
topology: v5e:2x2
jax: 0.10.0
libtpu: 0.0.40
codegen_flags: <defaults>
</compile_context>

<pallas_src>
import jax
import jax.numpy as jnp
from jax.experimental import pallas as pl
from jax.experimental.pallas import tpu as pltpu

# ---- small, forward-consistent dimensions ----
B, N = 2, 8      # batch, sentence length
V = 2            # attach valence
D = 2            # directions
DV = 2           # decision valence
E = 32           # embedding dim
H = 32           # hidden dim per sub-model
VOCAB = 64
MISC = 16        # per-sibling block width of the "rest" slab: [dec(D*DV) | root(1) | pad]

ATT_W = N * N * V            # 128 : attach slab width (one lane tile)
REST_W = N * MISC            # 128 : rest   slab width (one lane tile)
SLAB_W = ATT_W + REST_W      # 256 : fused output slab width

assert N * V == MISC         # attach per-sibling block width == rest block width (16)
assert ATT_W == 128 and REST_W == 128


# --------------------------- fused forward kernel ---------------------------
def _joint_fused_kernel(e_ref, wh_ref, whead_ref, slab_ref, kl_ref):
    e = e_ref[...]                                                             # (B*N, E)

    # both sub-models' hidden layers in one MXU matmul, one ReLU:  h = [relu(h1) | relu(h2)]
    h = jnp.maximum(jnp.dot(e, wh_ref[...], preferred_element_type=jnp.float32), 0.0)  # (B*N, 2H)

    # all heads of both sub-models in one MXU matmul; the vertical weight stacking makes the
    # joint broadcast-add (m1 tiled over siblings + m2) happen inside the MXU accumulation.
    slab_ref[...] = jnp.dot(h, whead_ref[...], preferred_element_type=jnp.float32)      # (B*N, 256)

    # kl = kl1 + kl2  (synthetic sub-model kl = 1e-3 * sum(h_i^2)) -> scalar in SMEM
    kl_ref[0, 0] = 1e-3 * jnp.sum(h * h)


def _joint_fused_call(e, p):
    vmem = lambda: pl.BlockSpec(memory_space=pltpu.MemorySpace.VMEM)
    return pl.pallas_call(
        _joint_fused_kernel,
        out_shape=(
            jax.ShapeDtypeStruct((B * N, SLAB_W), jnp.float32),   # fused (16, 256) slab
            jax.ShapeDtypeStruct((1, 1), jnp.float32),            # kl scalar
        ),
        in_specs=[vmem(), vmem(), vmem()],
        out_specs=(vmem(), pl.BlockSpec(memory_space=pltpu.MemorySpace.SMEM)),
    )(e, p['wh_cat'], p['whead_cat'])


# --------------------------- params (natural + kernel-packed layouts) ---------------------------
def _pack_kernel_weights(p):
    # fused hidden weight: [w1_h | w2_h] -> (E, 2H)
    wh_cat = jnp.concatenate([p['w1_h'], p['w2_h']], axis=1)

    # m1 "misc" block: [dec (D*DV) | root (1) | zero pad] -> (H, MISC)
    w1_misc = jnp.zeros((H, MISC), jnp.float32)
    w1_misc = w1_misc.at[:, :D * DV].set(p['w1_dec'])
    w1_misc = w1_misc.at[:, D * DV].set(p['w1_root'][:, 0])

    # m2 attach with sibling-major columns (sibling, child, V) so the m1 sibling broadcast is
    # a whole-lane-tile replication (which we fold into the weights below).
    w2_att_k = p['w2_att'].reshape(H, N, N, V).transpose(0, 2, 1, 3).reshape(H, ATT_W)

    # m2 "rest" slab: per-sibling block [dec2(sibling) | root2 (block 0 only) | zero pad]
    w2_rest = jnp.zeros((H, N, MISC), jnp.float32)
    w2_rest = w2_rest.at[:, :, :D * DV].set(p['w2_dec'].reshape(H, N, D * DV))
    w2_rest = w2_rest.at[:, 0, D * DV].set(p['w2_root'][:, 0])
    w2_rest = w2_rest.reshape(H, REST_W)

    # Fold m1's sibling-axis broadcast into the weights (tile the 16-wide blocks N times),
    # then stack m1 rows above m2 rows so  [h1|h2] @ W  ==  tile(m1_heads) + m2_heads.
    w_att = jnp.concatenate([jnp.tile(p['w1_att'], (1, N)), w2_att_k], axis=0)   # (2H, 128)
    w_rest = jnp.concatenate([jnp.tile(w1_misc, (1, N)), w2_rest], axis=0)       # (2H, 128)
    whead_cat = jnp.concatenate([w_att, w_rest], axis=1)                          # (2H, 256)

    return {'wh_cat': wh_cat, 'whead_cat': whead_cat}


def init_params(key):
    keys = jax.random.split(key, 9)
    s = 0.1
    p = {
        'emb':     s * jax.random.normal(keys[0], (VOCAB, E), jnp.float32),
        # first-order (NDMV-like)
        'w1_h':    s * jax.random.normal(keys[1], (E, H), jnp.float32),
        'w1_att':  s * jax.random.normal(keys[2], (H, N * V), jnp.float32),       # cols (child, V)
        'w1_dec':  s * jax.random.normal(keys[3], (H, D * DV), jnp.float32),      # cols (D, DV)
        'w1_root': s * jax.random.normal(keys[4], (H, 1), jnp.float32),
        # second-order (SiblingNDMV-like)
        'w2_h':    s * jax.random.normal(keys[5], (E, H), jnp.float32),
        'w2_att':  s * jax.random.normal(keys[6], (H, N * N * V), jnp.float32),   # cols (child, sibling, V)
        'w2_dec':  s * jax.random.normal(keys[7], (H, N * D * DV), jnp.float32),  # cols (sibling, D, DV)
        'w2_root': s * jax.random.normal(keys[8], (H, 1), jnp.float32),
    }
    p.update(_pack_kernel_weights(p))
    return p


# --------------------------- joint model forward (Pallas) ---------------------------
@jax.jit
def joint_model_forward(params, x):
    # embedding gather stays in XLA (tiny; layout plumbing only)
    e = jnp.take(params['emb'], x.reshape(-1), axis=0)                     # (B*N, E)

    slab, kl_o = _joint_fused_call(e, params)

    # unpack the lane-dense slab back into the module's natural shapes (XLA glue)
    att_o = slab[:, :ATT_W]                                                # (B*N, 128)
    rest_o = slab[:, ATT_W:]                                               # (B*N, 128)
    attach = att_o.reshape(B, N, N, N, V).transpose(0, 1, 3, 2, 4)         # (b, head, child, sibling, V)
    decision = rest_o.reshape(B, N, N, MISC)[..., :D * DV].reshape(B, N, N, D, DV)
    root = rest_o[:, D * DV].reshape(B, N)                                 # sibling-block 0, col D*DV
    return {'attach': attach, 'decision': decision, 'root': root, 'kl': kl_o[0, 0]}


# --------------------------- pure-JAX reference (same semantics as the PyTorch module) ---------------------------
def _submodel_ref(e, w_h, w_att, w_dec, w_root, att_shape, dec_shape):
    hp = jax.lax.Precision.HIGHEST
    h = jnp.maximum(jnp.dot(e, w_h, precision=hp), 0.0)
    return {'attach': jnp.dot(h, w_att, precision=hp).reshape(att_shape),
            'decision': jnp.dot(h, w_dec, precision=hp).reshape(dec_shape),
            'root': jnp.dot(h, w_root, precision=hp).reshape(B, N),
            'kl': 1e-3 * jnp.sum(h * h)}


def reference_forward(params, x):
    e = jnp.take(params['emb'], x.reshape(-1), axis=0)
    m1 = _submodel_ref(e, params['w1_h'], params['w1_att'], params['w1_dec'],
                       params['w1_root'], (B, N, N, V), (B, N, D, DV))
    m2 = _submodel_ref(e, params['w2_h'], params['w2_att'], params['w2_dec'],
                       params['w2_root'], (B, N, N, N, V), (B, N, N, D, DV))
    return {'attach': m1['attach'][:, :, :, None, :] + m2['attach'],        # unsqueeze(-2)
            'decision': m1['decision'][:, :, None, :, :] + m2['decision'],  # unsqueeze(2)
            'root': m1['root'] + m2['root'],
            'kl': m1['kl'] + m2['kl']}


if __name__ == "__main__":
    key = jax.random.PRNGKey(0)
    k_param, k_x = jax.random.split(key)
    params = init_params(k_param)
    x = jax.random.randint(k_x, (B, N), 0, VOCAB, dtype=jnp.int32)

    out = joint_model_forward(params, x)
    jax.block_until_ready(out)

    ref = reference_forward(params, x)

    assert out['attach'].shape == (B, N, N, N, V)
    assert out['decision'].shape == (B, N, N, D, DV)
    assert out['root'].shape == (B, N)
    assert jnp.allclose(out['attach'], ref['attach'], atol=1e-3, rtol=1e-3)
    assert jnp.allclose(out['decision'], ref['decision'], atol=1e-3, rtol=1e-3)
    assert jnp.allclose(out['root'], ref['root'], atol=1e-3, rtol=1e-3)
    assert jnp.allclose(out['kl'], ref['kl'], atol=1e-5, rtol=1e-2)

    print("KERNEL_OK")
</pallas_src>

<mosaic_0001>
module attributes {stable_mosaic.version = 11 : i64} {
  func.func @_joint_fused_kernel(%arg0: memref<16x32xf32, #tpu.memory_space<vmem>>, %arg1: memref<32x64xf32, #tpu.memory_space<vmem>>, %arg2: memref<64x256xf32, #tpu.memory_space<vmem>>, %arg3: memref<16x256xf32, #tpu.memory_space<vmem>>, %arg4: memref<1x1xf32, #tpu.memory_space<smem>>) attributes {dimension_semantics = [], scalar_prefetch = 0 : i64, scratch_operands = 0 : i64, tpu.core_type = #tpu.core_type<tc>} {
    %c0 = arith.constant 0 : index
    %c0_0 = arith.constant 0 : index
    %0 = vector.load %arg0[%c0, %c0_0] : memref<16x32xf32, #tpu.memory_space<vmem>>, vector<16x32xf32>
    %c0_1 = arith.constant 0 : index
    %c0_2 = arith.constant 0 : index
    %1 = vector.load %arg1[%c0_1, %c0_2] : memref<32x64xf32, #tpu.memory_space<vmem>>, vector<32x64xf32>
    %cst = arith.constant dense<0.000000e+00> : vector<16x64xf32>
    %2 = tpu.matmul %0, %1, %cst {dimension_numbers = #tpu.dot_dimension_numbers<[1], [0], [0], [1], [0, 0, 1, 1], [], []>} : vector<16x32xf32>, vector<32x64xf32>, vector<16x64xf32> -> vector<16x64xf32>
    %cst_3 = arith.constant 0.000000e+00 : f32
    %3 = vector.broadcast %cst_3 : f32 to vector<16x64xf32>
    %4 = arith.maximumf %2, %3 : vector<16x64xf32>
    %c0_4 = arith.constant 0 : index
    %c0_5 = arith.constant 0 : index
    %5 = vector.load %arg2[%c0_4, %c0_5] : memref<64x256xf32, #tpu.memory_space<vmem>>, vector<64x256xf32>
    %cst_6 = arith.constant dense<0.000000e+00> : vector<16x256xf32>
    %6 = tpu.matmul %4, %5, %cst_6 {dimension_numbers = #tpu.dot_dimension_numbers<[1], [0], [0], [1], [0, 0, 1, 1], [], []>} : vector<16x64xf32>, vector<64x256xf32>, vector<16x256xf32> -> vector<16x256xf32>
    %c0_7 = arith.constant 0 : index
    %c0_8 = arith.constant 0 : index
    %7 = vector.load %arg3[%c0_7, %c0_8] : memref<16x256xf32, #tpu.memory_space<vmem>>, vector<16x256xf32>
    tpu.vector_store %arg3[%c0_7, %c0_8], %6 {strides = array<i32>} : memref<16x256xf32, #tpu.memory_space<vmem>>, vector<16x256xf32>,
    %8 = arith.mulf %4, %4 : vector<16x64xf32>
    %9 = vector.shape_cast %8 : vector<16x64xf32> to vector<1x16x64xf32>
    %cst_9 = arith.constant dense<0.000000e+00> : vector<1xf32>
    %10 = vector.multi_reduction <add>, %9, %cst_9 [1, 2] : vector<1x16x64xf32> to vector<1xf32>
    %11 = vector.shape_cast %10 : vector<1xf32> to vector<1x1x1xf32>
    %12 = vector.extract %11[0, 0, 0] : f32 from vector<1x1x1xf32>
    %cst_10 = arith.constant 1.000000e-03 : f32
    %13 = arith.mulf %cst_10, %12 : f32
    %c0_11 = arith.constant 0 : index
    %c0_12 = arith.constant 0 : index
    %14 = memref.load %arg4[%c0_11, %c0_12] : memref<1x1xf32, #tpu.memory_space<smem>>
    memref.store %13, %arg4[%c0_11, %c0_12] : memref<1x1xf32, #tpu.memory_space<smem>>
    return
  }
}

</mosaic_0001>

<llo_original>
// kernel: squeeze.2
$region0: #{squeeze.2}
  %s0 = inlined_call_operand.vmem [shape: f32[16], index: 0, kind: input, shape index: {}]
  %s1 = inlined_call_operand.hbm [shape: f32[2,8], index: 1, kind: output, shape index: {}]
  $region1: #{squeeze.2} parent=0
    #allocation0 [shape = 'u8[1024]{0}', space=vmem, size = 0x400, scoped, tag = 'operand span for operand 1']
    #allocation1 [shape = 's32[1]{0}', space=sflag, size = 0x4, scoped, tag = 'scoped memory for squeeze.2']
    #allocation2 [shape = 'u8[4096]{0}', space=vmem, size = 0x1000, scoped, tag = 'scoped mem for output reshape']
    #allocation3 [shape = 'u8[4096]{0}', space=vmem, size = 0x1000, scoped, tag = 'scoped mem for input reshape']
    %2 = vsyncpa [#allocation1], 0
    %s4 = ssub.s32 2, 1
    %v5 = vld [vmem:[%s0] sm:%s4]
    %6 = vst [vmem:[#allocation3] sm:%s4] %v5
    %v7 = vld [vmem:[#allocation3] sm:$0x1]
    %vm8 = vcmask 64512
    %9 = vst.msk [vmem:[#allocation2] sm:$0x1] %vm8, %v7
    %v10 = vld [vmem:[#allocation3] sm:$0x1]
    %11 = vrot.lane.b32.xlu0 %v10, 120
    %v12 = vpop.permute.xlu0 %11
    %vm13 = vcmask 64512
    %s14 = scalar_lea.vmem [#allocation2], 1
    %15 = vst.msk [vmem:[%s14] sm:$0x1] %vm13, %v12
    %s17 = ssub.s32 4, 1
    %v18 = vld [vmem:[#allocation2] sm:%s17]
    %s20 = ssub.s32 4, 1
    %21 = vst [vmem:[#allocation0] sm:%s20] %v18
    %23 = vsyncadd [#allocation1], 0
    %s25 = sshll.u32 [#allocation0], 4
    %s26 = int_to_ptr.vmem [resolvable:$true] %s25
    %s27 = sshll.u32 %s1, 4
    %s28 = int_to_ptr.hbm [resolvable:$true] %s27
    %30 = dma.vmem_to_hbm [thread:$0]  %s26, 32, %s28, [#allocation1]
    %32 = dma.done [#allocation1], 32
    %33 = vsyncpa [#allocation1], 1

// kernel: joint_model_forward.1
$region0: #{joint_model_forward.1}
  #allocation0 [shape = 'u32[]', space=smem, size = 0x4, offset = 0x4, fixed_abs, tag = 'smem constant byte address 0x4 - core index']
  #allocation1 [shape = 'u32[72,128]{1,0:T(1,128)}', space=vmem, size = 0x9000, scoped, tag = 'internal scratch']
  %s0 = inlined_call_operand.vmem [shape: f32[16,32], index: 0, kind: input, shape index: {}]
  %s1 = inlined_call_operand.vmem [shape: f32[32,64], index: 1, kind: input, shape index: {}]
  %s2 = inlined_call_operand.vmem [shape: f32[64,256], index: 2, kind: input, shape index: {}]
  %s3 = inlined_call_operand.vmem [shape: f32[16,256], index: 3, kind: output, shape index: {0}]
  %s4 = inlined_call_operand.hbm [shape: f32[1,1], index: 4, kind: output, shape index: {1}]
  %5 = xla_tuple %s3, %s4
  %s6 = sld [smem:[#allocation0]]
  $region30: #{joint_model_forward.1} parent=0
    _
  %s8 = ssub.s32 1, %s6
  %s9 = scalar_select 0, %s8, %s6
  $region1: #{joint_model_forward.1} parent=0
    #allocation2 [shape = 'u8[512]{0}', space=smem, size = 0x200, scoped, tag = 'output window, operand 1, single buffered']
    #allocation3 [shape = 's32[1]{0}', space=sflag, size = 0x4, scoped, tag = 'scoped memory for joint_model_forward.1']
    %10 = vsyncpa [#allocation3], 0
    // Predicated region
    $region2: #{joint_model_forward.1} parent=1 // pred_check
      _
    $region3: #{joint_model_forward.1} parent=1 // pred_check_branch
      %12 = sbr.rel (0) target = $region5
    $region4: #{joint_model_forward.1} parent=1 // pred_region
      _
    $region5: #{joint_model_forward.1} parent=1 // pred_fallthru
      _
    // Predicated region
    $region6: #{joint_model_forward.1} parent=1 // pred_check
      _
    $region7: #{joint_model_forward.1} parent=1 // pred_check_branch
      %14 = sbr.rel (0) target = $region9
    $region8: #{joint_model_forward.1} parent=1 // pred_region
      _
    $region9: #{joint_model_forward.1} parent=1 // pred_fallthru
      _
    // Predicated region
    $region10: #{joint_model_forward.1} parent=1 // pred_check
      _
    $region11: #{joint_model_forward.1} parent=1 // pred_check_branch
      %16 = sbr.rel (0) target = $region13
    $region12: #{joint_model_forward.1} parent=1 // pred_region
      _
    $region13: #{joint_model_forward.1} parent=1 // pred_fallthru
      _
    %v17 = vld [vmem:[%s0] sm:$0xff]
    %v18 = vld [vmem:[%s0 + $0x8] sm:$0xff]
    %v19 = vld [vmem:[%s1] sm:$0xff]
    %v20 = vld [vmem:[%s1 + $0x8] sm:$0xff]
    %v21 = vld [vmem:[%s1 + $0x10] sm:$0xff]
    %v22 = vld [vmem:[%s1 + $0x18] sm:$0xff]
    %vm23 = vcmask 261120
    %v25 = vsel %vm23, %v17, 0
    %v28 = vsel %vm23, %v18, 0
    %30 = vmatpush.msra.mxu0 0.0
    %31 = vmatpush.msra.mxu0 0.0
    %32 = vmatpush.msra.mxu0 0.0
    %33 = vmatpush.msra.mxu0 0.0
    %34 = vmatpush.msra.mxu0 0.0
    %35 = vmatpush.msra.mxu0 0.0
    %36 = vmatpush.msra.mxu0 0.0
    %37 = vmatpush.msra.mxu0 0.0
    %38 = vmatpush.msra.mxu0 0.0
    %39 = vmatpush.msra.mxu0 0.0
    %40 = vmatpush.msra.mxu0 0.0
    %41 = vmatpush.msra.mxu0 0.0
    %42 = vmatpush.msra.mxu0 %v22
    %43 = vmatpush.msra.mxu0 %v21
    %44 = vmatpush.msra.mxu0 %v20
    %45 = vmatpush.msra.mxu0 %v19
    %46 = vmatmul.f32.gmra.mxu0 %v25
    %v47 = vpop.f32.mrf.mxu0
    %v48 = vadd.f32 0.0, %v47
    %49 = vmatmul.f32.gmra.mxu0 %v28
    %v50 = vpop.f32.mrf.mxu0
    %v51 = vadd.f32 0.0, %v50
    %52 = vdwg.mxu0
    %v53 = vmax.f32 %v48, 0.0
    %v54 = vmax.f32 %v51, 0.0
    %v55 = vld [vmem:[%s2] sm:$0xff]
    %v56 = vld [vmem:[%s2 + $0x8] sm:$0xff]
    %v57 = vld [vmem:[%s2 + $0x10] sm:$0xff]
    %v58 = vld [vmem:[%s2 + $0x18] sm:$0xff]
    %v59 = vld [vmem:[%s2 + $0x20] sm:$0xff]
    %v60 = vld [vmem:[%s2 + $0x28] sm:$0xff]
    %v61 = vld [vmem:[%s2 + $0x30] sm:$0xff]
    %v62 = vld [vmem:[%s2 + $0x38] sm:$0xff]
    %v63 = vld [vmem:[%s2 + $0x40] sm:$0xff]
    %v64 = vld [vmem:[%s2 + $0x48] sm:$0xff]
    %v65 = vld [vmem:[%s2 + $0x50] sm:$0xff]
    %v66 = vld [vmem:[%s2 + $0x58] sm:$0xff]
    %v67 = vld [vmem:[%s2 + $0x60] sm:$0xff]
    %v68 = vld [vmem:[%s2 + $0x68] sm:$0xff]
    %v69 = vld [vmem:[%s2 + $0x70] sm:$0xff]
    %v70 = vld [vmem:[%s2 + $0x78] sm:$0xff]
    %vm71 = vcmask 523264
    %v73 = vsel %vm71, %v53, 0
    %v76 = vsel %vm71, %v54, 0
    %78 = vmatpush.msra.mxu0 0.0
    %79 = vmatpush.msra.mxu0 0.0
    %80 = vmatpush.msra.mxu0 0.0
    %81 = vmatpush.msra.mxu0 0.0
    %82 = vmatpush.msra.mxu0 0.0
    %83 = vmatpush.msra.mxu0 0.0
    %84 = vmatpush.msra.mxu0 0.0
    %85 = vmatpush.msra.mxu0 0.0
    %86 = vmatpush.msra.mxu0 %v69
    %87 = vmatpush.msra.mxu0 %v67
    %88 = vmatpush.msra.mxu0 %v65
    %89 = vmatpush.msra.mxu0 %v63
    %90 = vmatpush.msra.mxu0 %v61
    %91 = vmatpush.msra.mxu0 %v59
    %92 = vmatpush.msra.mxu0 %v57
    %93 = vmatpush.msra.mxu0 %v55
    %94 = vmatmul.f32.gmra.mxu0 %v73
    %v95 = vpop.f32.mrf.mxu0
    %v96 = vadd.f32 0.0, %v95
    %97 = vmatmul.f32.gmra.mxu0 %v76
    %v98 = vpop.f32.mrf.mxu0
    %v99 = vadd.f32 0.0, %v98
    %100 = vdwg.mxu0
    %101 = vmatpush.msra.mxu0 0.0
    %102 = vmatpush.msra.mxu0 0.0
    %103 = vmatpush.msra.mxu0 0.0
    %104 = vmatpush.msra.mxu0 0.0
    %105 = vmatpush.msra.mxu0 0.0
    %106 = vmatpush.msra.mxu0 0.0
    %107 = vmatpush.msra.mxu0 0.0
    %108 = vmatpush.msra.mxu0 0.0
    %109 = vmatpush.msra.mxu0 %v70
    %110 = vmatpush.msra.mxu0 %v68
    %111 = vmatpush.msra.mxu0 %v66
    %112 = vmatpush.msra.mxu0 %v64
    %113 = vmatpush.msra.mxu0 %v62
    %114 = vmatpush.msra.mxu0 %v60
    %115 = vmatpush.msra.mxu0 %v58
    %116 = vmatpush.msra.mxu0 %v56
    %117 = vmatmul.f32.gmra.mxu0 %v73
    %v118 = vpop.f32.mrf.mxu0
    %v119 = vadd.f32 0.0, %v118
    %120 = vmatmul.f32.gmra.mxu0 %v76
    %v121 = vpop.f32.mrf.mxu0
    %v122 = vadd.f32 0.0, %v121
    %123 = vdwg.mxu0
    %124 = vst [vmem:[%s3] sm:$0xff] %v96
    %125 = vst [vmem:[%s3 + $0x8] sm:$0xff] %v119
    %126 = vst [vmem:[%s3 + $0x10] sm:$0xff] %v99
    %127 = vst [vmem:[%s3 + $0x18] sm:$0xff] %v122
    %v128 = vmul.f32 %v53, %v53
    %v129 = vmul.f32 %v54, %v54
    %v130 = vsel %vm71, %v128, 0.0
    %v131 = vsel %vm71, %v129, 0.0
    %v132 = vadd.f32 %v130, %v131
    %133 = vadd.xlane.f32.xlu0 %v132
    %v134 = vpop.xlane.xlu0 %133
    %v135 = vrot.slane %v134, 4
    %v136 = vadd.f32 %v134, %v135
    %v137 = vrot.slane %v136, 2
    %v138 = vadd.f32 %v136, %v137
    %v139 = vrot.slane %v138, 1
    %v140 = vadd.f32 %v138, %v139
    %s141 = vtos %v140
    %s142 = smul.f32 %s141, 0.001
    %s143 = scalar_lea.smem [#allocation2], 0
    %144 = sst [smem:[%s143]] %s142
    // Predicated region
    $region14: #{joint_model_forward.1} parent=1 // pred_check
      _
    $region15: #{joint_model_forward.1} parent=1 // pred_check_branch
      %146 = sbr.rel (0) target = $region17
    $region16: #{joint_model_forward.1} parent=1 // pred_region
      _
    $region17: #{joint_model_forward.1} parent=1 // pred_fallthru
      _
    // Predicated region
    $region18: #{joint_model_forward.1} parent=1 // pred_check
      _
    $region19: #{joint_model_forward.1} parent=1 // pred_check_branch
      %148 = sbr.rel (0) target = $region21
    $region20: #{joint_model_forward.1} parent=1 // pred_region
      %150 = vsyncadd [#allocation3], 0
      %s152 = sshll.u32 %s4, 4
      %s153 = int_to_ptr.hbm [resolvable:$true] %s152
      %155 = dma.smem_to_hbm [#allocation2], 16, %s153, [#allocation3]
    $region21: #{joint_model_forward.1} parent=1 // pred_fallthru
      _
    // Predicated region
    $region22: #{joint_model_forward.1} parent=1 // pred_check
      _
    $region23: #{joint_model_forward.1} parent=1 // pred_check_branch
      %157 = sbr.rel (0) target = $region25
    $region24: #{joint_model_forward.1} parent=1 // pred_region
      _
    $region25: #{joint_model_forward.1} parent=1 // pred_fallthru
      _
    // Predicated region
    $region26: #{joint_model_forward.1} parent=1 // pred_check
      _
    $region27: #{joint_model_forward.1} parent=1 // pred_check_branch
      %159 = sbr.rel (0) target = $region29
    $region28: #{joint_model_forward.1} parent=1 // pred_region
      %161 = dma.done [#allocation3], 16
    $region29: #{joint_model_forward.1} parent=1 // pred_fallthru
      _
    %162 = sfence
    %163 = vsyncpa [#allocation3], 1

</llo_original>
